<compile_context>
chip_gen: v6e
topology: v6e:2x2x1
jax: 0.10.0
libtpu: 0.0.40
codegen_flags: <defaults>
</compile_context>

<pallas_src>
import functools

import jax
import jax.numpy as jnp
from jax.experimental import pallas as pl
from jax.experimental.pallas import tpu as pltpu


def _round_up(x, m):
    return ((x + m - 1) // m) * m


def _vmem_budget_bytes():
    """Conservative per-kernel VMEM budget derived from the running chip."""
    try:
        cap = int(pltpu.get_tpu_info().vmem_capacity_bytes)
    except Exception:
        cap = 64 << 20  # v7x-safe default if the query is unavailable
    return int(cap * 0.6)  # headroom for compiler-internal scratch / pipeline


# ---------------------------------------------------------------------------
# Primary path: fused, VMEM-resident weights, grid over M only.
# ---------------------------------------------------------------------------
def _make_fused_kernel(concat, compute_dtype):
    def kernel(a_ref, wa_ref, ba_ref, b_ref, wb_ref, bb_ref, *out_refs):
        # bf16 x bf16 -> f32 MXU matmuls; bias added in f32.
        ya = jnp.dot(a_ref[...].astype(compute_dtype), wa_ref[...],
                     preferred_element_type=jnp.float32) + ba_ref[...]
        yb = jnp.dot(b_ref[...].astype(compute_dtype), wb_ref[...],
                     preferred_element_type=jnp.float32) + bb_ref[...]
        if concat:
            (o_ref,) = out_refs
            na = ya.shape[-1]  # static; caller guarantees na % 128 == 0
            o_ref[:, :na] = ya.astype(o_ref.dtype)   # lane-aligned store
            o_ref[:, na:] = yb.astype(o_ref.dtype)   # lane-aligned store
        else:
            oa_ref, ob_ref = out_refs
            oa_ref[...] = ya.astype(oa_ref.dtype)
            ob_ref[...] = yb.astype(ob_ref.dtype)
    return kernel


def _fused_resident_projection(a, b, wa_t, ba, wb_t, bb, *, concat, compute_dtype):
    """Both projections in one pallas_call with whole-K, VMEM-resident weights.

    Returns None when the weights do not fit the VMEM budget (caller falls
    back to the tiled path).
    """
    M, ka = a.shape
    mb, kb = b.shape
    assert M == mb, "a and b must share the batch dimension"
    na = wa_t.shape[1]
    nb = wb_t.shape[1]
    out_dtype = a.dtype

    budget = _vmem_budget_bytes()
    w_bytes = 2 * (ka * na + kb * nb) * wa_t.dtype.itemsize  # conservative 2x

    def vmem_needed(tm_):
        acts = 2 * tm_ * (ka + kb) * a.dtype.itemsize        # double-buffered
        outs = 2 * tm_ * (na + nb) * jnp.dtype(out_dtype).itemsize
        temps = tm_ * (na + nb) * 4                          # f32 ya / yb
        bias = 2 * (na + nb) * 4
        return w_bytes + acts + outs + temps + bias

    # Largest M tile that fits the budget; a single tile when M is small.
    tm = M if M <= 256 else 256
    while tm > 8 and vmem_needed(tm) > budget:
        tm = max(8, (tm // 2) // 8 * 8)
    if vmem_needed(tm) > budget:
        return None  # weights alone do not fit -> tiled fallback

    grid_m = pl.cdiv(M, tm)

    in_specs = [
        pl.BlockSpec((tm, ka), lambda i: (i, 0)),   # a tile (whole K)
        pl.BlockSpec((ka, na), lambda i: (0, 0)),   # Wa^T  (resident)
        pl.BlockSpec((1, na), lambda i: (0, 0)),    # bias_a (f32)
        pl.BlockSpec((tm, kb), lambda i: (i, 0)),   # b tile (whole K)
        pl.BlockSpec((kb, nb), lambda i: (0, 0)),   # Wb^T  (resident)
        pl.BlockSpec((1, nb), lambda i: (0, 0)),    # bias_b (f32)
    ]
    if concat:
        out_shape = jax.ShapeDtypeStruct((M, na + nb), out_dtype)
        out_specs = pl.BlockSpec((tm, na + nb), lambda i: (i, 0))
    else:
        out_shape = (jax.ShapeDtypeStruct((M, na), out_dtype),
                     jax.ShapeDtypeStruct((M, nb), out_dtype))
        out_specs = [pl.BlockSpec((tm, na), lambda i: (i, 0)),
                     pl.BlockSpec((tm, nb), lambda i: (i, 0))]

    return pl.pallas_call(
        _make_fused_kernel(concat, compute_dtype),
        out_shape=out_shape,
        grid_spec=pltpu.PrefetchScalarGridSpec(
            num_scalar_prefetch=0,
            grid=(grid_m,),
            in_specs=in_specs,
            out_specs=out_specs),
        compiler_params=pltpu.CompilerParams(
            dimension_semantics=("parallel",),
            vmem_limit_bytes=budget),
    )(a, wa_t, ba, b, wb_t, bb)


# ---------------------------------------------------------------------------
# Fallback path: canonical M/N/K-tiled matmul (used only when the fused
# weights cannot stay VMEM-resident, or when explicitly forced for testing).
# ---------------------------------------------------------------------------
def _tiled_matmul_kernel(x_ref, w_ref, bias_ref, o_ref, acc_ref, *, compute_dtype):
    k = pl.program_id(2)

    @pl.when(k == 0)
    def _():
        acc_ref[...] = jnp.zeros_like(acc_ref)

    acc_ref[...] += jnp.dot(x_ref[...].astype(compute_dtype), w_ref[...],
                            preferred_element_type=jnp.float32)

    @pl.when(k == pl.num_programs(2) - 1)
    def _():
        o_ref[...] = (acc_ref[...] + bias_ref[...]).astype(o_ref.dtype)


def _tiled_linear(x, w_t, bias, *, compute_dtype, tm=256, tn=256, tk=512):
    M, K = x.shape
    kw, N = w_t.shape
    assert K == kw
    out_dtype = x.dtype
    budget = _vmem_budget_bytes()

    tm = M if M <= tm else tm

    def need(tm_, tn_, tk_):
        return (2 * tm_ * tk_ * x.dtype.itemsize
                + 2 * tk_ * tn_ * w_t.dtype.itemsize
                + tm_ * tn_ * 4
                + 2 * tm_ * tn_ * jnp.dtype(out_dtype).itemsize
                + 2 * tn_ * 4)

    while tk > 128 and need(tm, tn, tk) > budget:
        tk //= 2
    while tn > 128 and need(tm, tn, tk) > budget:
        tn //= 2

    kp = _round_up(K, tk)
    np_ = _round_up(N, tn)
    x_p = jnp.pad(x, ((0, 0), (0, kp - K))) if kp != K else x
    w_p = w_t if (kp == K and np_ == N) else jnp.pad(w_t, ((0, kp - K), (0, np_ - N)))
    b_p = bias if np_ == N else jnp.pad(bias, ((0, 0), (0, np_ - N)))

    grid = (pl.cdiv(M, tm), np_ // tn, kp // tk)
    out = pl.pallas_call(
        functools.partial(_tiled_matmul_kernel, compute_dtype=compute_dtype),
        out_shape=jax.ShapeDtypeStruct((M, np_), out_dtype),
        grid_spec=pltpu.PrefetchScalarGridSpec(
            num_scalar_prefetch=0,
            grid=grid,
            in_specs=[pl.BlockSpec((tm, tk), lambda i, j, k: (i, k)),
                      pl.BlockSpec((tk, tn), lambda i, j, k: (k, j)),
                      pl.BlockSpec((1, tn), lambda i, j, k: (0, j))],
            out_specs=pl.BlockSpec((tm, tn), lambda i, j, k: (i, j)),
            scratch_shapes=[pltpu.VMEM((tm, tn), jnp.float32)]),
        compiler_params=pltpu.CompilerParams(
            dimension_semantics=("parallel", "parallel", "arbitrary"),
            vmem_limit_bytes=budget),
    )(x_p, w_p, b_p)
    return out if np_ == N else out[:, :N]


# ---------------------------------------------------------------------------
# Module
# ---------------------------------------------------------------------------
class FeatureProjection:
    """JAX/Pallas port of the PyTorch FeatureProjection module."""

    def __init__(self, in_dim_a, in_dim_b, out_dim_a, out_dim_b, key,
                 param_dtype=jnp.float32, compute_dtype=jnp.bfloat16):
        ka, kba, kb, kbb = jax.random.split(key, 4)
        lim_a = 1.0 / float(in_dim_a) ** 0.5
        lim_b = 1.0 / float(in_dim_b) ** 0.5
        # PyTorch-layout parameters (nn.Linear: weight [out, in], bias [out]).
        self.wa = jax.random.uniform(ka, (out_dim_a, in_dim_a), param_dtype, -lim_a, lim_a)
        self.ba = jax.random.uniform(kba, (out_dim_a,), param_dtype, -lim_a, lim_a)
        self.wb = jax.random.uniform(kb, (out_dim_b, in_dim_b), param_dtype, -lim_b, lim_b)
        self.bb = jax.random.uniform(kbb, (out_dim_b,), param_dtype, -lim_b, lim_b)
        self.out_dim_a, self.out_dim_b = out_dim_a, out_dim_b
        self.compute_dtype = compute_dtype

        # Kernel-layout parameters built ONCE:
        #   transposed to [in_dim, out_dim] and cast to the MXU-native bf16
        #   (halves weight DMA bytes).  Biases stay f32 (f32 bias add).
        self.wa_t = self.wa.T.astype(compute_dtype)
        self.wb_t = self.wb.T.astype(compute_dtype)
        self.ba_f32 = self.ba.reshape(1, -1).astype(jnp.float32)
        self.bb_f32 = self.bb.reshape(1, -1).astype(jnp.float32)

    def forward(self, a, b, *, force_tiled=False):
        return self._run(a, b, concat=False, force_tiled=force_tiled)

    def forward_concat(self, a, b, *, force_tiled=False):
        return self._run(a, b, concat=True, force_tiled=force_tiled)

    def _run(self, a, b, *, concat, force_tiled):
        # Fuse the concat into the kernel only when the boundary is
        # lane-aligned (out_dim_a % 128 == 0): two aligned, unmasked stores.
        # Otherwise compute both projections in one fused call and join them
        # with one XLA copy (avoids lane-rotated masked partial stores).
        fuse_concat = concat and (self.out_dim_a % 128 == 0)

        result = None
        if not force_tiled:
            result = _fused_resident_projection(
                a, b, self.wa_t, self.ba_f32, self.wb_t, self.bb_f32,
                concat=fuse_concat, compute_dtype=self.compute_dtype)
        if result is None:
            # Weights too large to stay VMEM-resident (or forced): run each
            # projection as an independent M/N/K-tiled matmul.
            result = (_tiled_linear(a, self.wa_t, self.ba_f32,
                                    compute_dtype=self.compute_dtype),
                      _tiled_linear(b, self.wb_t, self.bb_f32,
                                    compute_dtype=self.compute_dtype))
            if fuse_concat:
                result = jnp.concatenate(result, axis=1)

        if concat and not fuse_concat:
            result = jnp.concatenate(result, axis=1)
        return result


if __name__ == "__main__":
    key = jax.random.PRNGKey(0)
    k_mod, k_a, k_b, k_mod2, k_a2, k_b2 = jax.random.split(key, 6)

    def ref_linear(x, w, bias):
        # bf16-consistent reference (matches the kernel's bf16xbf16->f32 path).
        xq = x.astype(jnp.bfloat16).astype(jnp.float32)
        wq = w.astype(jnp.bfloat16).astype(jnp.float32)
        return xq @ wq.T + bias

    # --- test 1: small dims, lane-misaligned concat boundary (out_a = 64) ---
    batch = 8
    in_dim_a, in_dim_b = 32, 16
    out_dim_a, out_dim_b = 64, 48
    mod = FeatureProjection(in_dim_a, in_dim_b, out_dim_a, out_dim_b, k_mod)
    a = jax.random.normal(k_a, (batch, in_dim_a), jnp.float32)
    b = jax.random.normal(k_b, (batch, in_dim_b), jnp.float32)

    ya, yb = mod.forward(a, b)
    yc = mod.forward_concat(a, b)
    jax.block_until_ready((ya, yb, yc))

    ref_a = ref_linear(a, mod.wa, mod.ba)
    ref_b = ref_linear(b, mod.wb, mod.bb)
    assert ya.shape == (batch, out_dim_a) and yb.shape == (batch, out_dim_b)
    assert yc.shape == (batch, out_dim_a + out_dim_b)
    assert jnp.allclose(ya, ref_a, atol=2e-3, rtol=2e-3)
    assert jnp.allclose(yb, ref_b, atol=2e-3, rtol=2e-3)
    assert jnp.allclose(yc, jnp.concatenate([ref_a, ref_b], axis=1),
                        atol=2e-3, rtol=2e-3)

    # --- test 2: 128-aligned out_a -> fully fused in-kernel concat ----------
    batch2 = 16
    in2_a, in2_b = 384, 256
    out2_a, out2_b = 128, 192
    mod2 = FeatureProjection(in2_a, in2_b, out2_a, out2_b, k_mod2)
    a2 = jax.random.normal(k_a2, (batch2, in2_a), jnp.float32)
    b2 = jax.random.normal(k_b2, (batch2, in2_b), jnp.float32)

    ya2, yb2 = mod2.forward(a2, b2)
    yc2 = mod2.forward_concat(a2, b2)
    jax.block_until_ready((ya2, yb2, yc2))

    ref_a2 = ref_linear(a2, mod2.wa, mod2.ba)
    ref_b2 = ref_linear(b2, mod2.wb, mod2.bb)
    assert jnp.allclose(ya2, ref_a2, atol=5e-3, rtol=5e-3)
    assert jnp.allclose(yb2, ref_b2, atol=5e-3, rtol=5e-3)
    assert jnp.allclose(yc2, jnp.concatenate([ref_a2, ref_b2], axis=1),
                        atol=5e-3, rtol=5e-3)

    # --- test 3: exercise the M/N/K-tiled fallback path ----------------------
    ya2_f, yb2_f = mod2.forward(a2, b2, force_tiled=True)
    ya2_t = _tiled_linear(a2, mod2.wa_t, mod2.ba_f32,
                          compute_dtype=jnp.bfloat16, tm=8, tn=128, tk=128)
    jax.block_until_ready((ya2_f, yb2_f, ya2_t))
    assert jnp.allclose(ya2_f, ref_a2, atol=5e-3, rtol=5e-3)
    assert jnp.allclose(yb2_f, ref_b2, atol=5e-3, rtol=5e-3)
    assert jnp.allclose(ya2_t, ref_a2, atol=5e-3, rtol=5e-3)

    print("KERNEL_OK")
</pallas_src>

<mosaic_0001>
module attributes {stable_mosaic.version = 11 : i64} {
  func.func @kernel(%arg0: i32, %arg1: memref<8x32xf32, #tpu.memory_space<vmem>>, %arg2: memref<32x64xbf16, #tpu.memory_space<vmem>>, %arg3: memref<1x64xf32, #tpu.memory_space<vmem>>, %arg4: memref<8x16xf32, #tpu.memory_space<vmem>>, %arg5: memref<16x48xbf16, #tpu.memory_space<vmem>>, %arg6: memref<1x48xf32, #tpu.memory_space<vmem>>, %arg7: memref<8x64xf32, #tpu.memory_space<vmem>>, %arg8: memref<8x48xf32, #tpu.memory_space<vmem>>) attributes {dimension_semantics = [#tpu.dimension_semantics<parallel>], iteration_bounds = array<i64: 1>, scalar_prefetch = 0 : i64, scratch_operands = 0 : i64, tpu.core_type = #tpu.core_type<tc>, window_params = [{transform_indices = @transform_0, window_bounds = array<i64: 8, 32>}, {pipeline_mode = #tpu.pipeline_mode<synchronous>, transform_indices = @transform_1, window_bounds = array<i64: 32, 64>}, {pipeline_mode = #tpu.pipeline_mode<synchronous>, transform_indices = @transform_2, window_bounds = array<i64: 1, 64>}, {transform_indices = @transform_3, window_bounds = array<i64: 8, 16>}, {pipeline_mode = #tpu.pipeline_mode<synchronous>, transform_indices = @transform_4, window_bounds = array<i64: 16, 48>}, {pipeline_mode = #tpu.pipeline_mode<synchronous>, transform_indices = @transform_5, window_bounds = array<i64: 1, 48>}, {transform_indices = @transform_6, window_bounds = array<i64: 8, 64>}, {transform_indices = @transform_7, window_bounds = array<i64: 8, 48>}]} {
    %c0 = arith.constant 0 : index
    %c0_0 = arith.constant 0 : index
    %0 = vector.load %arg1[%c0, %c0_0] : memref<8x32xf32, #tpu.memory_space<vmem>>, vector<8x32xf32>
    %1 = arith.truncf %0 : vector<8x32xf32> to vector<8x32xbf16>
    %c0_1 = arith.constant 0 : index
    %c0_2 = arith.constant 0 : index
    %2 = vector.load %arg2[%c0_1, %c0_2] : memref<32x64xbf16, #tpu.memory_space<vmem>>, vector<32x64xbf16>
    %cst = arith.constant dense<0.000000e+00> : vector<8x64xf32>
    %3 = tpu.matmul %1, %2, %cst {dimension_numbers = #tpu.dot_dimension_numbers<[1], [0], [0], [1], [0, 0, 1, 1], [], []>} : vector<8x32xbf16>, vector<32x64xbf16>, vector<8x64xf32> -> vector<8x64xf32>
    %c0_3 = arith.constant 0 : index
    %c0_4 = arith.constant 0 : index
    %4 = vector.load %arg3[%c0_3, %c0_4] : memref<1x64xf32, #tpu.memory_space<vmem>>, vector<1x64xf32>
    %5 = vector.broadcast %4 : vector<1x64xf32> to vector<8x64xf32>
    %6 = arith.addf %3, %5 : vector<8x64xf32>
    %c0_5 = arith.constant 0 : index
    %c0_6 = arith.constant 0 : index
    %7 = vector.load %arg4[%c0_5, %c0_6] : memref<8x16xf32, #tpu.memory_space<vmem>>, vector<8x16xf32>
    %8 = arith.truncf %7 : vector<8x16xf32> to vector<8x16xbf16>
    %c0_7 = arith.constant 0 : index
    %c0_8 = arith.constant 0 : index
    %9 = vector.load %arg5[%c0_7, %c0_8] : memref<16x48xbf16, #tpu.memory_space<vmem>>, vector<16x48xbf16>
    %cst_9 = arith.constant dense<0.000000e+00> : vector<8x48xf32>
    %10 = tpu.matmul %8, %9, %cst_9 {dimension_numbers = #tpu.dot_dimension_numbers<[1], [0], [0], [1], [0, 0, 1, 1], [], []>} : vector<8x16xbf16>, vector<16x48xbf16>, vector<8x48xf32> -> vector<8x48xf32>
    %c0_10 = arith.constant 0 : index
    %c0_11 = arith.constant 0 : index
    %11 = vector.load %arg6[%c0_10, %c0_11] : memref<1x48xf32, #tpu.memory_space<vmem>>, vector<1x48xf32>
    %12 = vector.broadcast %11 : vector<1x48xf32> to vector<8x48xf32>
    %13 = arith.addf %10, %12 : vector<8x48xf32>
    %c0_12 = arith.constant 0 : index
    %c0_13 = arith.constant 0 : index
    %14 = vector.load %arg7[%c0_12, %c0_13] : memref<8x64xf32, #tpu.memory_space<vmem>>, vector<8x64xf32>
    tpu.vector_store %arg7[%c0_12, %c0_13], %6 {strides = array<i32>} : memref<8x64xf32, #tpu.memory_space<vmem>>, vector<8x64xf32>,
    %c0_14 = arith.constant 0 : index
    %c0_15 = arith.constant 0 : index
    %15 = vector.load %arg8[%c0_14, %c0_15] : memref<8x48xf32, #tpu.memory_space<vmem>>, vector<8x48xf32>
    tpu.vector_store %arg8[%c0_14, %c0_15], %13 {strides = array<i32>} : memref<8x48xf32, #tpu.memory_space<vmem>>, vector<8x48xf32>,
    return
  }
  func.func @transform_0(%arg0: i32) -> (i32, i32) {
    %c0_i32 = arith.constant 0 : i32
    %c0_i32_0 = arith.constant 0 : i32
    return %arg0, %c0_i32 : i32, i32
  }
  func.func @transform_1(%arg0: i32) -> (i32, i32) {
    %c0_i32 = arith.constant 0 : i32
    %c0_i32_0 = arith.constant 0 : i32
    %c0_i32_1 = arith.constant 0 : i32
    return %c0_i32, %c0_i32_0 : i32, i32
  }
  func.func @transform_2(%arg0: i32) -> (i32, i32) {
    %c0_i32 = arith.constant 0 : i32
    %c0_i32_0 = arith.constant 0 : i32
    %c0_i32_1 = arith.constant 0 : i32
    return %c0_i32, %c0_i32_0 : i32, i32
  }
  func.func @transform_3(%arg0: i32) -> (i32, i32) {
    %c0_i32 = arith.constant 0 : i32
    %c0_i32_0 = arith.constant 0 : i32
    return %arg0, %c0_i32 : i32, i32
  }
  func.func @transform_4(%arg0: i32) -> (i32, i32) {
    %c0_i32 = arith.constant 0 : i32
    %c0_i32_0 = arith.constant 0 : i32
    %c0_i32_1 = arith.constant 0 : i32
    return %c0_i32, %c0_i32_0 : i32, i32
  }
  func.func @transform_5(%arg0: i32) -> (i32, i32) {
    %c0_i32 = arith.constant 0 : i32
    %c0_i32_0 = arith.constant 0 : i32
    %c0_i32_1 = arith.constant 0 : i32
    return %c0_i32, %c0_i32_0 : i32, i32
  }
  func.func @transform_6(%arg0: i32) -> (i32, i32) {
    %c0_i32 = arith.constant 0 : i32
    %c0_i32_0 = arith.constant 0 : i32
    return %arg0, %c0_i32 : i32, i32
  }
  func.func @transform_7(%arg0: i32) -> (i32, i32) {
    %c0_i32 = arith.constant 0 : i32
    %c0_i32_0 = arith.constant 0 : i32
    return %arg0, %c0_i32 : i32, i32
  }
}

</mosaic_0001>

<llo_original>
// kernel: tpu_custom_call.1
$region0: #{tpu_custom_call.1}
  #allocation0 [shape = 'u32[]', space=smem, size = 0x4, offset = 0x4, fixed_abs, tag = 'smem constant byte address 0x4 - core index']
  #allocation1 [shape = 'u32[144,128]{1,0:T(1,128)}', space=vmem, size = 0x12000, scoped, tag = 'internal scratch']
  %s0 = inlined_call_operand.hbm [shape: f32[8,32], index: 0, kind: input, shape index: {}]
  %s1 = inlined_call_operand.hbm [shape: bf16[32,64], index: 1, kind: input, shape index: {}]
  %s2 = inlined_call_operand.vmem [shape: f32[1,64], index: 2, kind: input, shape index: {}]
  %s3 = inlined_call_operand.hbm [shape: f32[8,16], index: 3, kind: input, shape index: {}]
  %s4 = inlined_call_operand.hbm [shape: bf16[16,48], index: 4, kind: input, shape index: {}]
  %s5 = inlined_call_operand.vmem [shape: f32[1,48], index: 5, kind: input, shape index: {}]
  %s6 = inlined_call_operand.hbm [shape: f32[8,64], index: 6, kind: output, shape index: {0}]
  %s7 = inlined_call_operand.hbm [shape: f32[8,48], index: 7, kind: output, shape index: {1}]
  %8 = xla_tuple %s6, %s7
  %s9 = sld [smem:[#allocation0]]
  $region58: #{tpu_custom_call.1} parent=0
    _
  %s11 = ssub.s32 1, %s9
  %s12 = scalar_select 0, %s11, %s9
  $region1: #{tpu_custom_call.1} parent=0
    #allocation2 [shape = 'u8[4096]{0}', space=vmem, size = 0x1000, scoped, tag = 'input window, operand 0, single buffered']
    #allocation3 [shape = 's32[1]{0}', space=sflag, size = 0x4, scoped, tag = 'scoped memory for tpu_custom_call.1']
    #allocation4 [shape = 's32[1]{0}', space=sflag, size = 0x4, scoped, tag = 'scoped memory for tpu_custom_call.1']
    #allocation5 [shape = 'u8[8192]{0}', space=vmem, size = 0x2000, scoped, tag = 'input window, operand 1, single buffered']
    #allocation6 [shape = 's32[1]{0}', space=sflag, size = 0x4, scoped, tag = 'scoped memory for tpu_custom_call.1']
    #allocation7 [shape = 'u8[4096]{0}', space=vmem, size = 0x1000, scoped, tag = 'input window, operand 3, single buffered']
    #allocation8 [shape = 'u8[4096]{0}', space=vmem, size = 0x1000, scoped, tag = 'input window, operand 4, single buffered']
    #allocation9 [shape = 's32[1]{0}', space=sflag, size = 0x4, scoped, tag = 'scoped memory for tpu_custom_call.1']
    #allocation10 [shape = 'u8[4096]{0}', space=vmem, size = 0x1000, scoped, tag = 'output window, operand 0, single buffered']
    #allocation11 [shape = 'u8[4096]{0}', space=vmem, size = 0x1000, scoped, tag = 'output window, operand 1, single buffered']
    #allocation12 [shape = 's32[1]{0}', space=sflag, size = 0x4, scoped, tag = 'scoped memory for tpu_custom_call.1']
    %13 = vsyncpa [#allocation3], 0
    %14 = vsyncpa [#allocation6], 0
    %15 = vsyncpa [#allocation9], 0
    %16 = vsyncpa [#allocation4], 0
    %17 = vsyncpa [#allocation12], 0
    // Predicated region
    $region2: #{tpu_custom_call.1} parent=1 // pred_check
      _
    $region3: #{tpu_custom_call.1} parent=1 // pred_check_branch
      %19 = sbr.rel (0) target = $region5
    $region4: #{tpu_custom_call.1} parent=1 // pred_region
      %s21 = ssub.s32 128, 128
      %22 = vsyncadd [#allocation3], %s21
      %s24 = sshll.u32 [#allocation2], 4
      %s25 = int_to_ptr.vmem [resolvable:$true] %s24
      %27 = dma.hbm_to_vmem [thread:$0]  %s0, 128, %s25, [#allocation3]
    $region5: #{tpu_custom_call.1} parent=1 // pred_fallthru
      _
    // Predicated region
    $region6: #{tpu_custom_call.1} parent=1 // pred_check
      _
    $region7: #{tpu_custom_call.1} parent=1 // pred_check_branch
      %29 = sbr.rel (0) target = $region9
    $region8: #{tpu_custom_call.1} parent=1 // pred_region
      %s31 = ssub.s32 256, 256
      %32 = vsyncadd [#allocation6], %s31
      %s33 = sshll.u32 [#allocation5], 4
      %s34 = int_to_ptr.vmem [resolvable:$true] %s33
      %39 = dma.hbm_to_vmem [thread:$0]  %s1, 256, %s34, [#allocation6], 64, 64, 4
    $region9: #{tpu_custom_call.1} parent=1 // pred_fallthru
      _
    // Predicated region
    $region10: #{tpu_custom_call.1} parent=1 // pred_check
      _
    $region11: #{tpu_custom_call.1} parent=1 // pred_check_branch
      %41 = sbr.rel (0) target = $region13
    $region12: #{tpu_custom_call.1} parent=1 // pred_region
      _
    $region13: #{tpu_custom_call.1} parent=1 // pred_fallthru
      _
    // Predicated region
    $region14: #{tpu_custom_call.1} parent=1 // pred_check
      _
    $region15: #{tpu_custom_call.1} parent=1 // pred_check_branch
      %43 = sbr.rel (0) target = $region17
    $region16: #{tpu_custom_call.1} parent=1 // pred_region
      %s45 = ssub.s32 128, 128
      %46 = vsyncadd [#allocation6], %s45
      %s48 = sshll.u32 [#allocation7], 4
      %s49 = int_to_ptr.vmem [resolvable:$true] %s48
      %51 = dma.hbm_to_vmem [thread:$0]  %s3, 128, %s49, [#allocation6]
    $region17: #{tpu_custom_call.1} parent=1 // pred_fallthru
      _
    // Predicated region
    $region18: #{tpu_custom_call.1} parent=1 // pred_check
      _
    $region19: #{tpu_custom_call.1} parent=1 // pred_check_branch
      %53 = sbr.rel (0) target = $region21
    $region20: #{tpu_custom_call.1} parent=1 // pred_region
      %s55 = ssub.s32 128, 128
      %56 = vsyncadd [#allocation9], %s55
      %s57 = sshll.u32 [#allocation8], 4
      %s58 = int_to_ptr.vmem [resolvable:$true] %s57
      %63 = dma.hbm_to_vmem [thread:$0]  %s4, 128, %s58, [#allocation9], 64, 64, 4
    $region21: #{tpu_custom_call.1} parent=1 // pred_fallthru
      _
    // Predicated region
    $region22: #{tpu_custom_call.1} parent=1 // pred_check
      _
    $region23: #{tpu_custom_call.1} parent=1 // pred_check_branch
      %65 = sbr.rel (0) target = $region25
    $region24: #{tpu_custom_call.1} parent=1 // pred_region
      _
    $region25: #{tpu_custom_call.1} parent=1 // pred_fallthru
      _
    // Predicated region
    $region26: #{tpu_custom_call.1} parent=1 // pred_check
      _
    $region27: #{tpu_custom_call.1} parent=1 // pred_check_branch
      %67 = sbr.rel (0) target = $region29
    $region28: #{tpu_custom_call.1} parent=1 // pred_region
      %68 = dma.done [#allocation3], 128
    $region29: #{tpu_custom_call.1} parent=1 // pred_fallthru
      _
    // Predicated region
    $region30: #{tpu_custom_call.1} parent=1 // pred_check
      _
    $region31: #{tpu_custom_call.1} parent=1 // pred_check_branch
      %70 = sbr.rel (0) target = $region33
    $region32: #{tpu_custom_call.1} parent=1 // pred_region
      %71 = dma.done [#allocation6], 256
    $region33: #{tpu_custom_call.1} parent=1 // pred_fallthru
      _
    // Predicated region
    $region34: #{tpu_custom_call.1} parent=1 // pred_check
      _
    $region35: #{tpu_custom_call.1} parent=1 // pred_check_branch
      %73 = sbr.rel (0) target = $region37
    $region36: #{tpu_custom_call.1} parent=1 // pred_region
      %74 = dma.done [#allocation6], 128
    $region37: #{tpu_custom_call.1} parent=1 // pred_fallthru
      _
    // Predicated region
    $region38: #{tpu_custom_call.1} parent=1 // pred_check
      _
    $region39: #{tpu_custom_call.1} parent=1 // pred_check_branch
      %76 = sbr.rel (0) target = $region41
    $region40: #{tpu_custom_call.1} parent=1 // pred_region
      %77 = dma.done [#allocation9], 128
    $region41: #{tpu_custom_call.1} parent=1 // pred_fallthru
      _
    %v79 = vld [vmem:[#allocation2] sm:$0xff]
    %v80 = vpack.c.bf16 %v79, %v79
    %v81 = vld [vmem:[#allocation5] sm:$0xf]
    %v82 = vld [vmem:[#allocation5 + $0x4] sm:$0xf]
    %v83 = vld [vmem:[#allocation5 + $0x8] sm:$0xf]
    %v84 = vld [vmem:[#allocation5 + $0xc] sm:$0xf]
    %v85 = vld [vmem:[%s2] sm:$0x1]
    %v87 = vlaneseq
    %v88 = vshrl.u32 %v87, 7
    %v89 = vsub.s32 0, %v88
    %v90 = vrot.slane %v85, %v89
    %v96 = vunpack.c.l.b16 %v81
    %v97 = vunpack.c.l.b16 %v82
    %v98 = vunpack.c.l.b16 %v83
    %v99 = vunpack.c.l.b16 %v84
    %v100 = vpack.c.b16 %v97, %v96
    %v101 = vpack.c.b16 %v99, %v98
    %vm104 = vcmask 261120
    %v106 = vsel %vm104, %v80, 0
    %108 = vmatprep.subr.bf16.mxu0 0
    %109 = vmatpush1.bf16.msra.mxu0 0
    %110 = vmatprep.subr.bf16.mxu0 0
    %111 = vmatpush1.bf16.msra.mxu0 0
    %112 = vmatprep.subr.bf16.mxu0 0
    %113 = vmatpush1.bf16.msra.mxu0 0
    %114 = vmatprep.subr.bf16.mxu0 0
    %115 = vmatpush1.bf16.msra.mxu0 0
    %116 = vmatprep.subr.bf16.mxu0 0
    %117 = vmatpush1.bf16.msra.mxu0 0
    %118 = vmatprep.subr.bf16.mxu0 0
    %119 = vmatpush1.bf16.msra.mxu0 0
    %120 = vmatprep.subr.bf16.mxu0 0
    %121 = vmatpush1.bf16.msra.mxu0 %v101
    %122 = vmatprep.subr.bf16.mxu0 0
    %123 = vmatpush1.bf16.msra.mxu0 %v100
    %124 = vmatprep.subr.bf16.mxu0 0
    %125 = vmatpush2.bf16.msra.mxu0 0
    %126 = vmatprep.subr.bf16.mxu0 0
    %127 = vmatpush2.bf16.msra.mxu0 0
    %128 = vmatprep.subr.bf16.mxu0 0
    %129 = vmatpush2.bf16.msra.mxu0 0
    %130 = vmatprep.subr.bf16.mxu0 0
    %131 = vmatpush2.bf16.msra.mxu0 0
    %132 = vmatprep.subr.bf16.mxu0 0
    %133 = vmatpush2.bf16.msra.mxu0 0
    %134 = vmatprep.subr.bf16.mxu0 0
    %135 = vmatpush2.bf16.msra.mxu0 0
    %136 = vmatprep.subr.bf16.mxu0 0
    %137 = vmatpush2.bf16.msra.mxu0 0
    %138 = vmatprep.subr.bf16.mxu0 0
    %139 = vmatpush2.bf16.msra.mxu0 0
    %140 = vmatprep.mubr.bf16.mxu0 0
    %141 = vmatmul.mubr.bf16.gmra.mxu0 %v106
    %v142 = vpop.f32.mrf.mxu0
    %v143 = vadd.f32 %v90, %v142
    %v144 = vpop.f32.mrf.mxu0
    %v145 = vpop.f32.mrf.mxu0
    %v146 = vpop.f32.mrf.mxu0
    %147 = vdwg.mxu0
    %v148 = vld [vmem:[#allocation7] sm:$0xff]
    %v149 = vpack.c.bf16 %v148, %v148
    %v150 = vld [vmem:[#allocation8] sm:$0xf]
    %v151 = vld [vmem:[#allocation8 + $0x4] sm:$0xf]
    %v152 = vld [vmem:[%s5] sm:$0x1]
    %v154 = vlaneseq
    %v155 = vshrl.u32 %v154, 7
    %v156 = vsub.s32 0, %v155
    %v157 = vrot.slane %v152, %v156
    %v161 = vunpack.c.l.b16 %v150
    %v162 = vunpack.c.l.b16 %v151
    %v163 = vpack.c.b16 %v162, %v161
    %vm165 = vcmask 130048
    %v167 = vsel %vm165, %v149, 0
    %169 = vmatprep.subr.bf16.mxu0 0
    %170 = vmatpush1.bf16.msra.mxu0 0
    %171 = vmatprep.subr.bf16.mxu0 0
    %172 = vmatpush1.bf16.msra.mxu0 0
    %173 = vmatprep.subr.bf16.mxu0 0
    %174 = vmatpush1.bf16.msra.mxu0 0
    %175 = vmatprep.subr.bf16.mxu0 0
    %176 = vmatpush1.bf16.msra.mxu0 0
    %177 = vmatprep.subr.bf16.mxu0 0
    %178 = vmatpush1.bf16.msra.mxu0 0
    %179 = vmatprep.subr.bf16.mxu0 0
    %180 = vmatpush1.bf16.msra.mxu0 0
    %181 = vmatprep.subr.bf16.mxu0 0
    %182 = vmatpush1.bf16.msra.mxu0 0
    %183 = vmatprep.subr.bf16.mxu0 0
    %184 = vmatpush1.bf16.msra.mxu0 %v163
    %185 = vmatprep.subr.bf16.mxu0 0
    %186 = vmatpush2.bf16.msra.mxu0 0
    %187 = vmatprep.subr.bf16.mxu0 0
    %188 = vmatpush2.bf16.msra.mxu0 0
    %189 = vmatprep.subr.bf16.mxu0 0
    %190 = vmatpush2.bf16.msra.mxu0 0
    %191 = vmatprep.subr.bf16.mxu0 0
    %192 = vmatpush2.bf16.msra.mxu0 0
    %193 = vmatprep.subr.bf16.mxu0 0
    %194 = vmatpush2.bf16.msra.mxu0 0
    %195 = vmatprep.subr.bf16.mxu0 0
    %196 = vmatpush2.bf16.msra.mxu0 0
    %197 = vmatprep.subr.bf16.mxu0 0
    %198 = vmatpush2.bf16.msra.mxu0 0
    %199 = vmatprep.subr.bf16.mxu0 0
    %200 = vmatpush2.bf16.msra.mxu0 0
    %201 = vmatprep.mubr.bf16.mxu0 0
    %202 = vmatmul.mubr.bf16.gmra.mxu0 %v167
    %v203 = vpop.f32.mrf.mxu0
    %v204 = vadd.f32 %v157, %v203
    %v205 = vpop.f32.mrf.mxu0
    %v206 = vpop.f32.mrf.mxu0
    %v207 = vpop.f32.mrf.mxu0
    %208 = vdwg.mxu0
    %vm209 = vcmask 523264
    %210 = vst.msk [vmem:[#allocation10] sm:$0xff] %vm209, %v143
    %vm211 = vcmask 392192
    %212 = vst.msk [vmem:[#allocation11] sm:$0xff] %vm211, %v204
    // Predicated region
    $region42: #{tpu_custom_call.1} parent=1 // pred_check
      _
    $region43: #{tpu_custom_call.1} parent=1 // pred_check_branch
      %214 = sbr.rel (0) target = $region45
    $region44: #{tpu_custom_call.1} parent=1 // pred_region
      %s216 = ssub.s32 128, 128
      %217 = vsyncadd [#allocation4], %s216
      %s219 = sshll.u32 [#allocation10], 4
      %s220 = int_to_ptr.vmem [resolvable:$true] %s219
      %222 = dma.vmem_to_hbm [thread:$0]  %s220, 128, %s6, [#allocation4]
    $region45: #{tpu_custom_call.1} parent=1 // pred_fallthru
      _
    // Predicated region
    $region46: #{tpu_custom_call.1} parent=1 // pred_check
      _
    $region47: #{tpu_custom_call.1} parent=1 // pred_check_branch
      %224 = sbr.rel (0) target = $region49
    $region48: #{tpu_custom_call.1} parent=1 // pred_region
      %s226 = ssub.s32 128, 128
      %227 = vsyncadd [#allocation12], %s226
      %s229 = sshll.u32 [#allocation11], 4
      %s230 = int_to_ptr.vmem [resolvable:$true] %s229
      %232 = dma.vmem_to_hbm [thread:$0]  %s230, 128, %s7, [#allocation12]
    $region49: #{tpu_custom_call.1} parent=1 // pred_fallthru
      _
    // Predicated region
    $region50: #{tpu_custom_call.1} parent=1 // pred_check
      _
    $region51: #{tpu_custom_call.1} parent=1 // pred_check_branch
      %234 = sbr.rel (0) target = $region53
    $region52: #{tpu_custom_call.1} parent=1 // pred_region
      %235 = dma.done [#allocation4], 128
    $region53: #{tpu_custom_call.1} parent=1 // pred_fallthru
      _
    // Predicated region
    $region54: #{tpu_custom_call.1} parent=1 // pred_check
      _
    $region55: #{tpu_custom_call.1} parent=1 // pred_check_branch
      %237 = sbr.rel (0) target = $region57
    $region56: #{tpu_custom_call.1} parent=1 // pred_region
      %238 = dma.done [#allocation12], 128
    $region57: #{tpu_custom_call.1} parent=1 // pred_fallthru
      _
    %239 = vsyncpa [#allocation3], 1
    %240 = vsyncpa [#allocation6], 1
    %241 = vsyncpa [#allocation9], 1
    %242 = vsyncpa [#allocation4], 1
    %243 = vsyncpa [#allocation12], 1

</llo_original>
